<compile_context>
chip_gen: v7x
topology: tpu7x:2x2x1
jax: 0.10.0
libtpu: 0.0.40
codegen_flags: <defaults>
</compile_context>

<pallas_src>
import functools

import jax
import jax.numpy as jnp
from jax.experimental import pallas as pl
from jax.experimental.pallas import tpu as pltpu


# ~8 MiB blocks: at 3.2 TB/s (v7x, per TC) an 8 MiB in + 8 MiB out step takes
# ~5 us, so the ~0.35 us fixed per-grid-step overhead is <~7% (vs ~20% at
# 2 MiB blocks).  On v6e (~1.4 TB/s) / v5e (~0.8 TB/s) the step is even longer,
# so overhead is negligible there too.
_TARGET_TILE_BYTES = 8 * 1024 * 1024
# 2 buffers x (in + out) x 8 MiB = 32 MiB (+ margin).  This must be requested
# explicitly: the default scoped-VMEM limit is 16 MiB (v5e) / 32 MiB (v6e/v7x).
# Cap at 48 MiB to stay comfortably under v7x's 64 MiB physical VMEM.
_VMEM_LIMIT_CAP = 48 * 1024 * 1024


def _scale_kernel(x_ref, o_ref, *, scale: float):
    # Elementwise hot path: a single VPU multiply of the whole VMEM tile.
    # `scale` is a static Python float -> lowered as an immediate splat; weak
    # typing keeps float dtypes (f32/bf16) unchanged, and the explicit astype
    # makes integer inputs promote cleanly to the float output dtype.
    o_ref[...] = (x_ref[...] * scale).astype(o_ref.dtype)


def _scale_2d(x2d: jax.Array, scale: float, out_dtype, *, alias_input: bool = False):
    """Scale a 2-D lane-dense slab (rows, lane) with a tiled pallas_call."""
    rows, lane = x2d.shape
    in_item = jnp.dtype(x2d.dtype).itemsize
    out_item = jnp.dtype(out_dtype).itemsize

    if lane % 128 != 0 or rows <= 32:
        # Small or oddly shaped slab: one full-extent block (always legal,
        # since the block shape equals the full array dims).
        tile_rows = rows
    else:
        bytes_per_row = lane * max(in_item, out_item)
        tile_rows = max(32, min(rows, _TARGET_TILE_BYTES // bytes_per_row))
        tile_rows -= tile_rows % 32  # keep packed dtypes (bf16/int8) vreg-full
        # Guarantee >= 2 grid steps once the input is big enough to split, so
        # the "parallel" grid axis can be sharded across both TensorCores on
        # v7x (a 1-step grid leaves one TC and its HBM bandwidth idle).
        if rows >= 64:
            half = ((pl.cdiv(rows, 2) + 31) // 32) * 32
            tile_rows = min(tile_rows, half)
        tile_rows = min(tile_rows, rows)

    grid = (pl.cdiv(rows, tile_rows),)

    in_tile_bytes = tile_rows * lane * in_item
    out_tile_bytes = tile_rows * lane * out_item
    vmem_limit = int(
        min(max(2 * (in_tile_bytes + out_tile_bytes) + (2 << 20), 16 << 20),
            _VMEM_LIMIT_CAP))

    n = rows * lane
    cost = pl.CostEstimate(
        flops=n, transcendentals=0, bytes_accessed=n * (in_item + out_item))

    # Aliasing is only valid (and only useful) when in/out buffers match; it
    # avoids a second full-size HBM output allocation when the caller donates x.
    aliases = {0: 0} if (alias_input and x2d.dtype == jnp.dtype(out_dtype)) else {}

    return pl.pallas_call(
        functools.partial(_scale_kernel, scale=float(scale)),
        out_shape=jax.ShapeDtypeStruct((rows, lane), out_dtype),
        grid_spec=pltpu.PrefetchScalarGridSpec(
            num_scalar_prefetch=0,
            grid=grid,
            in_specs=[pl.BlockSpec((tile_rows, lane), lambda i: (i, 0))],
            out_specs=pl.BlockSpec((tile_rows, lane), lambda i: (i, 0)),
        ),
        compiler_params=pltpu.CompilerParams(
            dimension_semantics=("parallel",),
            vmem_limit_bytes=vmem_limit,
        ),
        cost_estimate=cost,
        input_output_aliases=aliases,
    )(x2d)


def scale_feat(x: jax.Array, scale_factor: float = 50.0, *,
               donate_input: bool = False) -> jax.Array:
    """Pallas equivalent of ScaleFeat.forward: input * scale_factor.

    `donate_input=True` adds input_output_aliases={0: 0} so the kernel writes
    into the input's HBM buffer; only enable it when the caller donates `x`
    (e.g. jax.jit donate_argnums), otherwise XLA inserts a defensive copy.
    Note: scale_factor is a static Python float (module hyper-parameter); if a
    traced/runtime scale were ever needed it should be passed via SMEM instead.
    """
    orig_shape = x.shape
    # Floats keep their dtype (weak Python-float promotion); integer inputs
    # promote to float, matching `int_tensor * 50.0` semantics.
    out_dtype = (x.dtype if jnp.issubdtype(x.dtype, jnp.floating)
                 else jnp.result_type(x.dtype, jnp.float32))

    flat = x.reshape(-1)
    n = flat.shape[0]

    # Widest lane-dense last dim that divides n exactly: zero-copy reshape and
    # the (tile_rows, lane) block spans whole rows, so every HBM DMA is fully
    # contiguous and every store is an unmasked full-lane vst.
    lane = None
    for cand in (1024, 512, 256, 128):
        if n % cand == 0:
            lane = cand
            break

    if lane is not None:
        out2d = _scale_2d(flat.reshape(n // lane, lane), scale_factor,
                          out_dtype, alias_input=donate_input)
        return out2d.reshape(orig_shape)

    # Rare fallback (n not a multiple of 128): scale the 128-aligned prefix
    # with the tiled kernel and the (<128-element) tail with a tiny
    # full-extent-block call, then stitch them back together.  This costs one
    # extra HBM pass (the concatenate) instead of the two extra passes a full
    # jnp.pad + out[:n] round trip would cost.
    n_main = (n // 128) * 128
    pieces = []
    if n_main:
        main = _scale_2d(flat[:n_main].reshape(n_main // 128, 128),
                         scale_factor, out_dtype)
        pieces.append(main.reshape(-1))
    if n_main < n:
        tail = _scale_2d(flat[n_main:].reshape(1, n - n_main),
                         scale_factor, out_dtype)
        pieces.append(tail.reshape(-1))
    out = pieces[0] if len(pieces) == 1 else jnp.concatenate(pieces)
    return out.reshape(orig_shape)


if __name__ == "__main__":
    key = jax.random.PRNGKey(0)

    # Primary shape implied by the module: small NCHW feature map.
    x = jax.random.normal(key, (2, 4, 16, 16), dtype=jnp.float32)
    out = jax.block_until_ready(scale_feat(x, scale_factor=50.0))
    ref = x * 50.0
    assert out.shape == x.shape
    assert out.dtype == x.dtype
    assert jnp.allclose(out, ref, atol=1e-6, rtol=1e-6)

    # Exercise the n % 128 != 0 fallback (no pad/slice HBM round trip).
    y = jax.random.normal(jax.random.PRNGKey(1), (2, 3, 5, 5), dtype=jnp.float32)
    out_y = jax.block_until_ready(scale_feat(y, scale_factor=50.0))
    assert out_y.shape == y.shape and out_y.dtype == y.dtype
    assert jnp.allclose(out_y, y * 50.0, atol=1e-6, rtol=1e-6)

    print("KERNEL_OK")
</pallas_src>

<mosaic_0001>
module attributes {stable_mosaic.version = 11 : i64} {
  func.func @_scale_kernel(%arg0: i32, %arg1: memref<2x1024xf32, #tpu.memory_space<vmem>>, %arg2: memref<2x1024xf32, #tpu.memory_space<vmem>>) attributes {dimension_semantics = [#tpu.dimension_semantics<parallel>], iteration_bounds = array<i64: 1>, scalar_prefetch = 0 : i64, scratch_operands = 0 : i64, tpu.core_type = #tpu.core_type<tc>, window_params = [{transform_indices = @transform_0, window_bounds = array<i64: 2, 1024>}, {transform_indices = @transform_1, window_bounds = array<i64: 2, 1024>}]} {
    %c0 = arith.constant 0 : index
    %c0_0 = arith.constant 0 : index
    %0 = vector.load %arg1[%c0, %c0_0] : memref<2x1024xf32, #tpu.memory_space<vmem>>, vector<2x1024xf32>
    %cst = arith.constant 5.000000e+01 : f32
    %1 = vector.broadcast %cst : f32 to vector<2x1024xf32>
    %2 = arith.mulf %0, %1 : vector<2x1024xf32>
    %c0_1 = arith.constant 0 : index
    %c0_2 = arith.constant 0 : index
    %3 = vector.load %arg2[%c0_1, %c0_2] : memref<2x1024xf32, #tpu.memory_space<vmem>>, vector<2x1024xf32>
    tpu.vector_store %arg2[%c0_1, %c0_2], %2 {strides = array<i32>} : memref<2x1024xf32, #tpu.memory_space<vmem>>, vector<2x1024xf32>,
    return
  }
  func.func @transform_0(%arg0: i32) -> (i32, i32) {
    %c0_i32 = arith.constant 0 : i32
    %c0_i32_0 = arith.constant 0 : i32
    return %arg0, %c0_i32 : i32, i32
  }
  func.func @transform_1(%arg0: i32) -> (i32, i32) {
    %c0_i32 = arith.constant 0 : i32
    %c0_i32_0 = arith.constant 0 : i32
    return %arg0, %c0_i32 : i32, i32
  }
}

</mosaic_0001>

<llo_original>
// kernel: tpu_custom_call.1
$region0: #{tpu_custom_call.1}
  #allocation0 [shape = 'u32[]', space=smem, size = 0x4, offset = 0x4, fixed_abs, tag = 'smem constant byte address 0x4 - core index']
  #allocation1 [shape = 'u32[144,128]{1,0:T(1,128)}', space=vmem, size = 0x12000, scoped, tag = 'internal scratch']
  %s0 = inlined_call_operand.hbm [shape: f32[2,1024], index: 0, kind: input, shape index: {}]
  %s1 = inlined_call_operand.hbm [shape: f32[2,1024], index: 1, kind: output, shape index: {}]
  %s2 = sld [smem:[#allocation0]]
  $region18: #{tpu_custom_call.1} parent=0
    _
  %s4 = ssub.s32 1, %s2
  %s5 = scalar_select 0, %s4, %s2
  $region1: #{tpu_custom_call.1} parent=0
    #allocation2 [shape = 'u8[8192]{0}', space=vmem, size = 0x2000, scoped, tag = 'input window, operand 0, single buffered']
    #allocation3 [shape = 's32[1]{0}', space=sflag, size = 0x4, scoped, tag = 'scoped memory for tpu_custom_call.1']
    #allocation4 [shape = 's32[1]{0}', space=sflag, size = 0x4, scoped, tag = 'scoped memory for tpu_custom_call.1']
    #allocation5 [shape = 'u8[8192]{0}', space=vmem, size = 0x2000, scoped, tag = 'output window, operand 0, single buffered']
    %6 = vsyncpa [#allocation3], 0
    %7 = vsyncpa [#allocation4], 0
    // Predicated region
    $region2: #{tpu_custom_call.1} parent=1 // pred_check
      _
    $region3: #{tpu_custom_call.1} parent=1 // pred_check_branch
      %9 = sbr.rel (0) target = $region5
    $region4: #{tpu_custom_call.1} parent=1 // pred_region
      %s11 = ssub.s32 256, 256
      %12 = vsyncadd [#allocation3], %s11
      %s14 = sshll.u32 [#allocation2], 4
      %s15 = int_to_ptr.vmem [resolvable:$true] %s14
      %17 = dma.hbm_to_vmem [thread:$0]  %s0, 256, %s15, [#allocation3]
    $region5: #{tpu_custom_call.1} parent=1 // pred_fallthru
      _
    // Predicated region
    $region6: #{tpu_custom_call.1} parent=1 // pred_check
      _
    $region7: #{tpu_custom_call.1} parent=1 // pred_check_branch
      %19 = sbr.rel (0) target = $region9
    $region8: #{tpu_custom_call.1} parent=1 // pred_region
      %20 = dma.done [#allocation3], 256
    $region9: #{tpu_custom_call.1} parent=1 // pred_fallthru
      _
    %v21 = vld [vmem:[#allocation2] sm:$0xff]
    %v22 = vld [vmem:[#allocation2 + $0x8] sm:$0xff]
    %v23 = vmul.f32 %v21, 50.0
    %v24 = vmul.f32 %v22, 50.0
    %25 = vst [vmem:[#allocation5] sm:$0xff] %v23
    %26 = vst [vmem:[#allocation5 + $0x8] sm:$0xff] %v24
    // Predicated region
    $region10: #{tpu_custom_call.1} parent=1 // pred_check
      _
    $region11: #{tpu_custom_call.1} parent=1 // pred_check_branch
      %28 = sbr.rel (0) target = $region13
    $region12: #{tpu_custom_call.1} parent=1 // pred_region
      %s30 = ssub.s32 256, 256
      %31 = vsyncadd [#allocation4], %s30
      %s33 = sshll.u32 [#allocation5], 4
      %s34 = int_to_ptr.vmem [resolvable:$true] %s33
      %36 = dma.vmem_to_hbm [thread:$0]  %s34, 256, %s1, [#allocation4]
    $region13: #{tpu_custom_call.1} parent=1 // pred_fallthru
      _
    // Predicated region
    $region14: #{tpu_custom_call.1} parent=1 // pred_check
      _
    $region15: #{tpu_custom_call.1} parent=1 // pred_check_branch
      %38 = sbr.rel (0) target = $region17
    $region16: #{tpu_custom_call.1} parent=1 // pred_region
      %39 = dma.done [#allocation4], 256
    $region17: #{tpu_custom_call.1} parent=1 // pred_fallthru
      _
    %40 = vsyncpa [#allocation3], 1
    %41 = vsyncpa [#allocation4], 1

</llo_original>
